<compile_context>
chip_gen: v7x
topology: tpu7x:2x2x1
jax: 0.10.0
libtpu: 0.0.40
codegen_flags: <defaults>
</compile_context>

<pallas_src>
import math
import functools

import jax
import jax.numpy as jnp
from jax.experimental import pallas as pl
from jax.experimental.pallas import tpu as pltpu

_GELU_C = math.sqrt(2.0 / math.pi)
_MIB = 1024 * 1024


def _new_gelu_f32(h):
    # new_gelu (tanh approximation, as in the reference), computed in f32.
    return 0.5 * h * (1.0 + jnp.tanh(_GELU_C * (h + 0.044715 * (h * h * h))))


# --------------------------- kernels -------------------------------------
def _mlp_kernel_resident(x_ref, wfc_ref, bfc_ref, wproj_ref, bproj_ref, o_ref):
    """Weights-resident path.  Grid = (M_pad // tm,).

    Both weight BlockSpecs use grid-invariant index maps, so Pallas DMAs them
    once for the entire kernel; HBM traffic is activation-dominated and no
    accumulator scratch / read-modify-write pass is needed.

    x_ref:     (tm, D)  bf16 token tile
    wfc_ref:   (D, H)   bf16 full W_fc
    bfc_ref:   (1, H)   f32  b_fc
    wproj_ref: (H, D)   bf16 full W_proj
    bproj_ref: (1, D)   f32  b_proj
    o_ref:     (tm, D)  output tile
    """
    h = jnp.dot(x_ref[...], wfc_ref[...], preferred_element_type=jnp.float32)
    h = h + bfc_ref[...]
    h = _new_gelu_f32(h)
    y = jnp.dot(h.astype(wproj_ref.dtype), wproj_ref[...],
                preferred_element_type=jnp.float32)
    # Dropout: module evaluated deterministically (eval / p=0.0) -> identity.
    # TODO(synk): training-mode dropout would need pltpu.prng_seed +
    # pltpu.prng_random_bits masking here.
    o_ref[...] = (y + bproj_ref[...]).astype(o_ref.dtype)


def _mlp_kernel_stream(x_ref, wfc_ref, bfc_ref, wproj_ref, bproj_ref, o_ref,
                       acc_ref):
    """Streaming path.  Grid = (M_pad // tm, H // th); h (last, "arbitrary")
    is a reduction over hidden chunks accumulated into acc_ref.

    x_ref:     (tm, D)  bf16 token tile
    wfc_ref:   (D, th)  bf16 W_fc chunk
    bfc_ref:   (1, th)  f32  b_fc chunk
    wproj_ref: (th, D)  bf16 W_proj chunk
    bproj_ref: (1, D)   f32  b_proj (added once at finalize)
    o_ref:     (tm, D)  output tile (written at the last h step)
    acc_ref:   (tm, D)  f32 accumulator scratch
    """
    h_idx = pl.program_id(1)

    @pl.when(h_idx == 0)
    def _():
        acc_ref[...] = jnp.zeros_like(acc_ref)

    h = jnp.dot(x_ref[...], wfc_ref[...], preferred_element_type=jnp.float32)
    h = h + bfc_ref[...]
    h = _new_gelu_f32(h)
    acc_ref[...] += jnp.dot(h.astype(wproj_ref.dtype), wproj_ref[...],
                            preferred_element_type=jnp.float32)

    # Dropout: eval / p=0.0 -> identity.  TODO(synk): see resident kernel.
    @pl.when(h_idx == pl.num_programs(1) - 1)
    def _():
        o_ref[...] = (acc_ref[...] + bproj_ref[...]).astype(o_ref.dtype)


# --------------------------- planning helpers -----------------------------
def _round_up(a, b):
    return (a + b - 1) // b * b


def _vmem_capacity_bytes():
    try:
        cap = int(pltpu.get_tpu_info().vmem_capacity_bytes)
        if cap >= 32 * _MIB:
            return cap
    except Exception:
        pass
    return 64 * _MIB  # conservative fallback: v7x per-TC physical VMEM


def _pick_th(H, tile_h):
    """Largest multiple-of-128 divisor of H that is <= tile_h."""
    best = 0
    for t in range(128, min(tile_h, H) + 1, 128):
        if H % t == 0:
            best = t
    # H not a multiple of 128 only happens for tiny demo configs -> full H.
    return best if best else H


def _resident_vmem_bytes(tm, D, H, out_isz):
    # Double buffers are allocated for every input even though the weight
    # index maps are grid-invariant (DMA'd once); account 2x for the gate.
    return (2 * tm * D * 2            # x tiles (bf16, 2 bufs)
            + 2 * tm * D * out_isz    # out tiles (2 bufs)
            + 2 * 2 * D * H * 2       # W_fc + W_proj (bf16, 2 bufs each)
            + 2 * (H + D) * 4         # biases (f32, 2 bufs)
            + 3 * tm * H * 4)         # live f32 hidden intermediates (headroom)


def _stream_vmem_bytes(tm, th, D, H, out_isz):
    return (2 * tm * D * 2
            + 2 * tm * D * out_isz
            + 2 * 2 * D * th * 2      # W_fc/W_proj chunks (bf16, 2 bufs each)
            + 2 * (th + D) * 4
            + tm * D * 4              # f32 accumulator scratch
            + 3 * tm * th * 4)        # live f32 GELU intermediates


def _plan_tiles(M, D, H, tile_m, tile_h, out_isz, budget):
    """Returns (mode, tm, th).  mode in {"resident", "stream"}."""
    # Row tile: multiple of 8 (sublane), clamped to (padded) M.
    tm_cap = _round_up(min(tile_m, _round_up(M, 8)), 8)
    # v7x megacore: a single row tile leaves one TensorCore idle; split when
    # there's enough work for two.
    if M >= 512 and _round_up(M, tm_cap) // tm_cap == 1:
        tm_cap = max(256, _round_up(-(-M // 2), 256))
    cands = sorted({tm_cap, *[t for t in (1024, 768, 512, 256) if t <= tm_cap]},
                   reverse=True)

    # Weights-resident fast path (th = H): prefer the largest tm that fits.
    for tm in cands:
        if _resident_vmem_bytes(tm, D, H, out_isz) <= budget:
            return "resident", tm, H

    # Streaming path: bounded hidden chunk + f32 accumulator.  Prefer growing
    # tm over th (total weight HBM traffic is independent of th).
    th = _pick_th(H, tile_h)
    for tm in cands:
        if _stream_vmem_bytes(tm, th, D, H, out_isz) <= budget:
            return "stream", tm, th
    return "stream", cands[-1], th  # best effort; compiler may still spill


# --------------------------- public wrapper -------------------------------
@functools.partial(jax.jit, static_argnames=("tile_m", "tile_h", "out_dtype"))
def mlp_pallas(x, w_fc, b_fc, w_proj, b_proj, *, tile_m=1024, tile_h=512,
               out_dtype=None):
    """Fused GPT MLP.  x: [B, T, D] -> [B, T, D].

    w_fc: [D, 4D], w_proj: [4D, D] (already transposed vs nn.Linear).  Pass
    weights in bf16 at rest to avoid a per-call cast pass; pass
    out_dtype=jnp.bfloat16 to halve output writeback.
    """
    B, T, D = x.shape
    H = w_fc.shape[1]
    M = B * T
    if out_dtype is None:
        out_dtype = x.dtype
    out_isz = jnp.dtype(out_dtype).itemsize

    capacity = _vmem_capacity_bytes()
    budget = max(capacity - 8 * _MIB, 24 * _MIB)  # compiler-scratch headroom

    mode, tm, th = _plan_tiles(M, D, H, tile_m, tile_h, out_isz, budget)
    M_pad = _round_up(M, tm)
    n_m = M_pad // tm

    # Operands: bf16 matmul streams (no-op if already bf16 at rest), f32 biases.
    x2d = x.reshape(M, D).astype(jnp.bfloat16)
    if M_pad != M:
        x2d = jnp.pad(x2d, ((0, M_pad - M), (0, 0)))
    wfc = w_fc.astype(jnp.bfloat16)
    wproj = w_proj.astype(jnp.bfloat16)
    bfc2 = b_fc.reshape(1, H).astype(jnp.float32)
    bproj2 = b_proj.reshape(1, D).astype(jnp.float32)

    # VMEM limit: above the 16/32 MiB scoped default, below physical capacity
    # minus headroom (per generation: ~56 MiB on v7x, ~120 MiB on v5e/v6e).
    if mode == "resident":
        est = _resident_vmem_bytes(tm, D, H, out_isz)
    else:
        est = _stream_vmem_bytes(tm, th, D, H, out_isz)
    vmem_limit = int(min(max(est + est // 4, 32 * _MIB), budget))

    # Cost estimate with *streamed* bytes: weights are re-read once per M tile
    # on the streaming path, once total on the resident path.
    w_reads = 1 if mode == "resident" else n_m
    cost = pl.CostEstimate(
        flops=4 * M_pad * D * H,
        transcendentals=M_pad * H,
        bytes_accessed=(M_pad * D * 2                  # x (bf16)
                        + w_reads * 2 * D * H * 2      # both weights (bf16)
                        + (H + D) * 4                  # biases
                        + M_pad * D * out_isz),        # output
    )

    if mode == "resident":
        kernel = _mlp_kernel_resident
        grid_spec = pltpu.PrefetchScalarGridSpec(
            num_scalar_prefetch=0,
            grid=(n_m,),
            in_specs=[
                pl.BlockSpec((tm, D), lambda i: (i, 0)),   # x tile
                pl.BlockSpec((D, H), lambda i: (0, 0)),    # W_fc (resident)
                pl.BlockSpec((1, H), lambda i: (0, 0)),    # b_fc
                pl.BlockSpec((H, D), lambda i: (0, 0)),    # W_proj (resident)
                pl.BlockSpec((1, D), lambda i: (0, 0)),    # b_proj
            ],
            out_specs=pl.BlockSpec((tm, D), lambda i: (i, 0)),
        )
        dim_sem = ("parallel",)
    else:
        kernel = _mlp_kernel_stream
        grid_spec = pltpu.PrefetchScalarGridSpec(
            num_scalar_prefetch=0,
            grid=(n_m, H // th),
            in_specs=[
                pl.BlockSpec((tm, D), lambda i, h: (i, 0)),   # x tile
                pl.BlockSpec((D, th), lambda i, h: (0, h)),   # W_fc chunk
                pl.BlockSpec((1, th), lambda i, h: (0, h)),   # b_fc chunk
                pl.BlockSpec((th, D), lambda i, h: (h, 0)),   # W_proj chunk
                pl.BlockSpec((1, D), lambda i, h: (0, 0)),    # b_proj
            ],
            out_specs=pl.BlockSpec((tm, D), lambda i, h: (i, 0)),
            scratch_shapes=[pltpu.VMEM((tm, D), jnp.float32)],
        )
        dim_sem = ("parallel", "arbitrary")

    out2d = pl.pallas_call(
        kernel,
        out_shape=jax.ShapeDtypeStruct((M_pad, D), out_dtype),
        grid_spec=grid_spec,
        compiler_params=pltpu.CompilerParams(
            dimension_semantics=dim_sem, vmem_limit_bytes=vmem_limit),
        cost_estimate=cost,
    )(x2d, wfc, bfc2, wproj, bproj2)

    if M_pad != M:
        out2d = out2d[:M]
    return out2d.reshape(B, T, D)


# ---------------------------- references --------------------------------
def new_gelu_ref(x):
    return 0.5 * x * (1.0 + jnp.tanh(
        math.sqrt(2.0 / math.pi) * (x + 0.044715 * jnp.power(x, 3.0))))


def mlp_ref_bf16(x2d, w_fc, b_fc, w_proj, b_proj):
    """Reference matching the kernel's bf16-in / f32-accumulate numerics."""
    h = jnp.dot(x2d.astype(jnp.bfloat16), w_fc.astype(jnp.bfloat16),
                preferred_element_type=jnp.float32) + b_fc
    h = new_gelu_ref(h)
    return jnp.dot(h.astype(jnp.bfloat16), w_proj.astype(jnp.bfloat16),
                   preferred_element_type=jnp.float32) + b_proj


def mlp_ref_f32(x2d, w_fc, b_fc, w_proj, b_proj):
    h = new_gelu_ref(x2d @ w_fc + b_fc)
    return h @ w_proj + b_proj


if __name__ == "__main__":
    # Small GPT-like config: n_embd=32, hidden=4*32=128, batch=2, seq=8,
    # bias=True, dropout=0.0 (identity).  Real configs (n_embd>=768) keep the
    # lane axis dense; the demo D=32 is just for a quick correctness run.
    B, T, D = 2, 8, 32
    H = 4 * D

    key = jax.random.PRNGKey(0)
    kx, kw1, kb1, kw2, kb2 = jax.random.split(key, 5)

    x = jax.random.normal(kx, (B, T, D), dtype=jnp.float32)
    w_fc = jax.random.normal(kw1, (D, H), dtype=jnp.float32) / math.sqrt(D)
    b_fc = jax.random.normal(kb1, (H,), dtype=jnp.float32) * 0.01
    w_proj = jax.random.normal(kw2, (H, D), dtype=jnp.float32) / math.sqrt(H)
    b_proj = jax.random.normal(kb2, (D,), dtype=jnp.float32) * 0.01

    # Store matmul weights in bf16 at rest -> the in-wrapper cast is a no-op
    # (avoids a per-call f32->bf16 pass over both weight matrices).
    w_fc_bf = w_fc.astype(jnp.bfloat16)
    w_proj_bf = w_proj.astype(jnp.bfloat16)

    out = mlp_pallas(x, w_fc_bf, b_fc, w_proj_bf, b_proj)
    out = jax.block_until_ready(out)

    x2d = x.reshape(B * T, D)
    ref_bf16 = mlp_ref_bf16(x2d, w_fc, b_fc, w_proj, b_proj).reshape(B, T, D)
    ref_f32 = mlp_ref_f32(x2d, w_fc, b_fc, w_proj, b_proj).reshape(B, T, D)

    err_bf16 = jnp.max(jnp.abs(out - ref_bf16))
    err_f32 = jnp.max(jnp.abs(out - ref_f32))
    assert jnp.allclose(out, ref_bf16, atol=1e-2, rtol=1e-2), (
        f"max abs err vs bf16 ref {err_bf16}")
    assert jnp.allclose(out, ref_f32, atol=1e-1, rtol=1e-1), (
        f"max abs err vs f32 ref {err_f32}")

    print("KERNEL_OK")
</pallas_src>

<mosaic_0001>
module attributes {stable_mosaic.version = 11 : i64} {
  func.func @_mlp_kernel_resident(%arg0: i32, %arg1: memref<16x32xbf16, #tpu.memory_space<vmem>>, %arg2: memref<32x128xbf16, #tpu.memory_space<vmem>>, %arg3: memref<1x128xf32, #tpu.memory_space<vmem>>, %arg4: memref<128x32xbf16, #tpu.memory_space<vmem>>, %arg5: memref<1x32xf32, #tpu.memory_space<vmem>>, %arg6: memref<16x32xf32, #tpu.memory_space<vmem>>) attributes {dimension_semantics = [#tpu.dimension_semantics<parallel>], iteration_bounds = array<i64: 1>, scalar_prefetch = 0 : i64, scratch_operands = 0 : i64, tpu.core_type = #tpu.core_type<tc>, window_params = [{transform_indices = @transform_0, window_bounds = array<i64: 16, 32>}, {pipeline_mode = #tpu.pipeline_mode<synchronous>, transform_indices = @transform_1, window_bounds = array<i64: 32, 128>}, {pipeline_mode = #tpu.pipeline_mode<synchronous>, transform_indices = @transform_2, window_bounds = array<i64: 1, 128>}, {pipeline_mode = #tpu.pipeline_mode<synchronous>, transform_indices = @transform_3, window_bounds = array<i64: 128, 32>}, {pipeline_mode = #tpu.pipeline_mode<synchronous>, transform_indices = @transform_4, window_bounds = array<i64: 1, 32>}, {transform_indices = @transform_5, window_bounds = array<i64: 16, 32>}]} {
    %c0 = arith.constant 0 : index
    %c0_0 = arith.constant 0 : index
    %0 = vector.load %arg1[%c0, %c0_0] : memref<16x32xbf16, #tpu.memory_space<vmem>>, vector<16x32xbf16>
    %c0_1 = arith.constant 0 : index
    %c0_2 = arith.constant 0 : index
    %1 = vector.load %arg2[%c0_1, %c0_2] : memref<32x128xbf16, #tpu.memory_space<vmem>>, vector<32x128xbf16>
    %cst = arith.constant dense<0.000000e+00> : vector<16x128xf32>
    %2 = tpu.matmul %0, %1, %cst {dimension_numbers = #tpu.dot_dimension_numbers<[1], [0], [0], [1], [0, 0, 1, 1], [], []>} : vector<16x32xbf16>, vector<32x128xbf16>, vector<16x128xf32> -> vector<16x128xf32>
    %c0_3 = arith.constant 0 : index
    %c0_4 = arith.constant 0 : index
    %3 = vector.load %arg3[%c0_3, %c0_4] : memref<1x128xf32, #tpu.memory_space<vmem>>, vector<1x128xf32>
    %4 = vector.broadcast %3 : vector<1x128xf32> to vector<16x128xf32>
    %5 = arith.addf %2, %4 : vector<16x128xf32>
    %cst_5 = arith.constant 5.000000e-01 : f32
    %6 = vector.broadcast %cst_5 : f32 to vector<16x128xf32>
    %7 = arith.mulf %6, %5 : vector<16x128xf32>
    %8 = arith.mulf %5, %5 : vector<16x128xf32>
    %9 = arith.mulf %8, %5 : vector<16x128xf32>
    %cst_6 = arith.constant 4.471500e-02 : f32
    %10 = vector.broadcast %cst_6 : f32 to vector<16x128xf32>
    %11 = arith.mulf %10, %9 : vector<16x128xf32>
    %12 = arith.addf %5, %11 : vector<16x128xf32>
    %cst_7 = arith.constant 0.797884583 : f32
    %13 = vector.broadcast %cst_7 : f32 to vector<16x128xf32>
    %14 = arith.mulf %13, %12 : vector<16x128xf32>
    %15 = math.tanh %14 : vector<16x128xf32>
    %cst_8 = arith.constant 1.000000e+00 : f32
    %16 = vector.broadcast %cst_8 : f32 to vector<16x128xf32>
    %17 = arith.addf %16, %15 : vector<16x128xf32>
    %18 = arith.mulf %7, %17 : vector<16x128xf32>
    %19 = arith.truncf %18 : vector<16x128xf32> to vector<16x128xbf16>
    %c0_9 = arith.constant 0 : index
    %c0_10 = arith.constant 0 : index
    %20 = vector.load %arg4[%c0_9, %c0_10] : memref<128x32xbf16, #tpu.memory_space<vmem>>, vector<128x32xbf16>
    %cst_11 = arith.constant dense<0.000000e+00> : vector<16x32xf32>
    %21 = tpu.matmul %19, %20, %cst_11 {dimension_numbers = #tpu.dot_dimension_numbers<[1], [0], [0], [1], [0, 0, 1, 1], [], []>} : vector<16x128xbf16>, vector<128x32xbf16>, vector<16x32xf32> -> vector<16x32xf32>
    %c0_12 = arith.constant 0 : index
    %c0_13 = arith.constant 0 : index
    %22 = vector.load %arg5[%c0_12, %c0_13] : memref<1x32xf32, #tpu.memory_space<vmem>>, vector<1x32xf32>
    %23 = vector.broadcast %22 : vector<1x32xf32> to vector<16x32xf32>
    %24 = arith.addf %21, %23 : vector<16x32xf32>
    %c0_14 = arith.constant 0 : index
    %c0_15 = arith.constant 0 : index
    %25 = vector.load %arg6[%c0_14, %c0_15] : memref<16x32xf32, #tpu.memory_space<vmem>>, vector<16x32xf32>
    tpu.vector_store %arg6[%c0_14, %c0_15], %24 {strides = array<i32>} : memref<16x32xf32, #tpu.memory_space<vmem>>, vector<16x32xf32>,
    return
  }
  func.func @transform_0(%arg0: i32) -> (i32, i32) {
    %c0_i32 = arith.constant 0 : i32
    %c0_i32_0 = arith.constant 0 : i32
    return %arg0, %c0_i32 : i32, i32
  }
  func.func @transform_1(%arg0: i32) -> (i32, i32) {
    %c0_i32 = arith.constant 0 : i32
    %c0_i32_0 = arith.constant 0 : i32
    %c0_i32_1 = arith.constant 0 : i32
    return %c0_i32, %c0_i32_0 : i32, i32
  }
  func.func @transform_2(%arg0: i32) -> (i32, i32) {
    %c0_i32 = arith.constant 0 : i32
    %c0_i32_0 = arith.constant 0 : i32
    %c0_i32_1 = arith.constant 0 : i32
    return %c0_i32, %c0_i32_0 : i32, i32
  }
  func.func @transform_3(%arg0: i32) -> (i32, i32) {
    %c0_i32 = arith.constant 0 : i32
    %c0_i32_0 = arith.constant 0 : i32
    %c0_i32_1 = arith.constant 0 : i32
    return %c0_i32, %c0_i32_0 : i32, i32
  }
  func.func @transform_4(%arg0: i32) -> (i32, i32) {
    %c0_i32 = arith.constant 0 : i32
    %c0_i32_0 = arith.constant 0 : i32
    %c0_i32_1 = arith.constant 0 : i32
    return %c0_i32, %c0_i32_0 : i32, i32
  }
  func.func @transform_5(%arg0: i32) -> (i32, i32) {
    %c0_i32 = arith.constant 0 : i32
    %c0_i32_0 = arith.constant 0 : i32
    return %arg0, %c0_i32 : i32, i32
  }
}

</mosaic_0001>

<llo_original>
// kernel: mlp_pallas.1
$region0: #{mlp_pallas.1}
  #allocation0 [shape = 'u32[]', space=smem, size = 0x4, offset = 0x4, fixed_abs, tag = 'smem constant byte address 0x4 - core index']
  #allocation1 [shape = 'u32[144,128]{1,0:T(1,128)}', space=vmem, size = 0x12000, scoped, tag = 'internal scratch']
  %s0 = inlined_call_operand.vmem [shape: bf16[16,32], index: 0, kind: input, shape index: {}]
  %s1 = inlined_call_operand.vmem [shape: bf16[32,128], index: 1, kind: input, shape index: {}]
  %s2 = inlined_call_operand.vmem [shape: f32[1,128], index: 2, kind: input, shape index: {}]
  %s3 = inlined_call_operand.vmem [shape: bf16[128,32], index: 3, kind: input, shape index: {}]
  %s4 = inlined_call_operand.vmem [shape: f32[1,32], index: 4, kind: input, shape index: {}]
  %s5 = inlined_call_operand.hbm [shape: f32[16,32], index: 5, kind: output, shape index: {}]
  %s6 = sld [smem:[#allocation0]]
  $region30: #{mlp_pallas.1} parent=0
    _
  %s8 = ssub.s32 1, %s6
  %s9 = scalar_select 0, %s8, %s6
  $region1: #{mlp_pallas.1} parent=0
    #allocation2 [shape = 'u8[8192]{0}', space=vmem, size = 0x2000, scoped, tag = 'output window, operand 0, single buffered']
    #allocation3 [shape = 's32[1]{0}', space=sflag, size = 0x4, scoped, tag = 'scoped memory for mlp_pallas.1']
    %10 = vsyncpa [#allocation3], 0
    // Predicated region
    $region2: #{mlp_pallas.1} parent=1 // pred_check
      _
    $region3: #{mlp_pallas.1} parent=1 // pred_check_branch
      %12 = sbr.rel (0) target = $region5
    $region4: #{mlp_pallas.1} parent=1 // pred_region
      _
    $region5: #{mlp_pallas.1} parent=1 // pred_fallthru
      _
    // Predicated region
    $region6: #{mlp_pallas.1} parent=1 // pred_check
      _
    $region7: #{mlp_pallas.1} parent=1 // pred_check_branch
      %14 = sbr.rel (0) target = $region9
    $region8: #{mlp_pallas.1} parent=1 // pred_region
      _
    $region9: #{mlp_pallas.1} parent=1 // pred_fallthru
      _
    // Predicated region
    $region10: #{mlp_pallas.1} parent=1 // pred_check
      _
    $region11: #{mlp_pallas.1} parent=1 // pred_check_branch
      %16 = sbr.rel (0) target = $region13
    $region12: #{mlp_pallas.1} parent=1 // pred_region
      _
    $region13: #{mlp_pallas.1} parent=1 // pred_fallthru
      _
    // Predicated region
    $region14: #{mlp_pallas.1} parent=1 // pred_check
      _
    $region15: #{mlp_pallas.1} parent=1 // pred_check_branch
      %18 = sbr.rel (0) target = $region17
    $region16: #{mlp_pallas.1} parent=1 // pred_region
      _
    $region17: #{mlp_pallas.1} parent=1 // pred_fallthru
      _
    // Predicated region
    $region18: #{mlp_pallas.1} parent=1 // pred_check
      _
    $region19: #{mlp_pallas.1} parent=1 // pred_check_branch
      %20 = sbr.rel (0) target = $region21
    $region20: #{mlp_pallas.1} parent=1 // pred_region
      _
    $region21: #{mlp_pallas.1} parent=1 // pred_fallthru
      _
    %v22 = vld [vmem:[%s0] sm:$0xf]
    %v23 = vld [vmem:[%s0 + $0x4] sm:$0xf]
    %v24 = vld [vmem:[%s1] sm:$0xf]
    %v25 = vld [vmem:[%s1 + $0x4] sm:$0xf]
    %v26 = vld [vmem:[%s1 + $0x8] sm:$0xf]
    %v27 = vld [vmem:[%s1 + $0xc] sm:$0xf]
    %v28 = vld [vmem:[%s2] sm:$0x1]
    %v30 = vlaneseq
    %v31 = vshrl.u32 %v30, 7
    %v32 = vsub.s32 0, %v31
    %v33 = vrot.slane %v28, %v32
    %v37 = vunpack.c.l.b16 %v22
    %v38 = vunpack.c.l.b16 %v23
    %v39 = vpack.c.b16 %v38, %v37
    %v44 = vunpack.c.l.b16 %v24
    %v45 = vunpack.c.l.b16 %v25
    %v46 = vunpack.c.l.b16 %v26
    %v47 = vunpack.c.l.b16 %v27
    %v48 = vpack.c.b16 %v45, %v44
    %v49 = vpack.c.b16 %v47, %v46
    %vm52 = vcmask 261120
    %v54 = vsel %vm52, %v39, 0
    %56 = vmatprep.subr.bf16.mxu0 0
    %57 = vmatpush1.bf16.msra.mxu0 %v48
    %58 = vmatprep.subr.bf16.mxu0 0
    %59 = vmatpush1.bf16.msra.mxu0 %v49
    %60 = vmatprep.subr.bf16.mxu0 0
    %61 = vmatpush1.bf16.msra.mxu0 0
    %62 = vmatprep.subr.bf16.mxu0 0
    %63 = vmatpush1.bf16.msra.mxu0 0
    %64 = vmatprep.subr.bf16.mxu0 0
    %65 = vmatpush1.bf16.msra.mxu0 0
    %66 = vmatprep.subr.bf16.mxu0 0
    %67 = vmatpush1.bf16.msra.mxu0 0
    %68 = vmatprep.subr.bf16.mxu0 0
    %69 = vmatpush1.bf16.msra.mxu0 0
    %70 = vmatprep.subr.bf16.mxu0 0
    %71 = vmatpush1.bf16.msra.mxu0 0
    %72 = vmatprep.subr.bf16.mxu0 0
    %73 = vmatpush1.bf16.msra.mxu0 0
    %74 = vmatprep.subr.bf16.mxu0 0
    %75 = vmatpush1.bf16.msra.mxu0 0
    %76 = vmatprep.subr.bf16.mxu0 0
    %77 = vmatpush1.bf16.msra.mxu0 0
    %78 = vmatprep.subr.bf16.mxu0 0
    %79 = vmatpush1.bf16.msra.mxu0 0
    %80 = vmatprep.subr.bf16.mxu0 0
    %81 = vmatpush1.bf16.msra.mxu0 0
    %82 = vmatprep.subr.bf16.mxu0 0
    %83 = vmatpush1.bf16.msra.mxu0 0
    %84 = vmatprep.subr.bf16.mxu0 0
    %85 = vmatpush1.bf16.msra.mxu0 0
    %86 = vmatprep.subr.bf16.mxu0 0
    %87 = vmatpush1.bf16.msra.mxu0 0
    %88 = vmatprep.mubr.bf16.mxu0 0
    %89 = vmatmul.mubr.bf16.gmra.mrb[0].mxu0 %v54
    %v90 = vpop.f32.mrb[0].mxu0
    %v91 = vadd.f32 %v33, %v90
    %v92 = vpop.f32.mrb[0].mxu0
    %v93 = vpop.f32.mrb[0].mxu0
    %v94 = vadd.f32 %v33, %v93
    %v95 = vpop.f32.mrb[0].mxu0
    %96 = vdwg.mxu0
    %v97 = vmul.f32 %v91, 0.5
    %v98 = vmul.f32 %v94, 0.5
    %v99 = vmul.f32 %v91, %v91
    %v100 = vmul.f32 %v94, %v94
    %v101 = vmul.f32 %v99, %v91
    %v102 = vmul.f32 %v100, %v94
    %v103 = vmul.f32 %v101, 0.044715
    %v104 = vmul.f32 %v102, 0.044715
    %v105 = vadd.f32 %v91, %v103
    %v106 = vadd.f32 %v94, %v104
    %v107 = vmul.f32 %v105, 0.7978846
    %v108 = vmul.f32 %v106, 0.7978846
    %v109 = vtanh.pop %v107
    %v110 = vtanh.pop %v108
    %v111 = vadd.f32 %v109, 1.0
    %v112 = vadd.f32 %v110, 1.0
    %v113 = vmul.f32 %v97, %v111
    %v114 = vmul.f32 %v98, %v112
    %v115 = vpack.c.bf16 %v114, %v113
    %v116 = vld [vmem:[%s3] sm:$0xf]
    %v117 = vld [vmem:[%s3 + $0x4] sm:$0xf]
    %v118 = vld [vmem:[%s3 + $0x8] sm:$0xf]
    %v119 = vld [vmem:[%s3 + $0xc] sm:$0xf]
    %v120 = vld [vmem:[%s3 + $0x10] sm:$0xf]
    %v121 = vld [vmem:[%s3 + $0x14] sm:$0xf]
    %v122 = vld [vmem:[%s3 + $0x18] sm:$0xf]
    %v123 = vld [vmem:[%s3 + $0x1c] sm:$0xf]
    %v124 = vld [vmem:[%s3 + $0x20] sm:$0xf]
    %v125 = vld [vmem:[%s3 + $0x24] sm:$0xf]
    %v126 = vld [vmem:[%s3 + $0x28] sm:$0xf]
    %v127 = vld [vmem:[%s3 + $0x2c] sm:$0xf]
    %v128 = vld [vmem:[%s3 + $0x30] sm:$0xf]
    %v129 = vld [vmem:[%s3 + $0x34] sm:$0xf]
    %v130 = vld [vmem:[%s3 + $0x38] sm:$0xf]
    %v131 = vld [vmem:[%s3 + $0x3c] sm:$0xf]
    %v132 = vld [vmem:[%s4] sm:$0x1]
    %v134 = vlaneseq
    %v135 = vshrl.u32 %v134, 7
    %v136 = vsub.s32 0, %v135
    %v137 = vrot.slane %v132, %v136
    %v155 = vunpack.c.l.b16 %v116
    %v156 = vunpack.c.l.b16 %v117
    %v157 = vunpack.c.l.b16 %v118
    %v158 = vunpack.c.l.b16 %v119
    %v159 = vunpack.c.l.b16 %v120
    %v160 = vunpack.c.l.b16 %v121
    %v161 = vunpack.c.l.b16 %v122
    %v162 = vunpack.c.l.b16 %v123
    %v163 = vunpack.c.l.b16 %v124
    %v164 = vunpack.c.l.b16 %v125
    %v165 = vunpack.c.l.b16 %v126
    %v166 = vunpack.c.l.b16 %v127
    %v167 = vunpack.c.l.b16 %v128
    %v168 = vunpack.c.l.b16 %v129
    %v169 = vunpack.c.l.b16 %v130
    %v170 = vunpack.c.l.b16 %v131
    %v171 = vpack.c.b16 %v156, %v155
    %v172 = vpack.c.b16 %v158, %v157
    %v173 = vpack.c.b16 %v160, %v159
    %v174 = vpack.c.b16 %v162, %v161
    %v175 = vpack.c.b16 %v164, %v163
    %v176 = vpack.c.b16 %v166, %v165
    %v177 = vpack.c.b16 %v168, %v167
    %v178 = vpack.c.b16 %v170, %v169
    %187 = vmatprep.subr.bf16.mxu0 0
    %188 = vmatpush1.bf16.msra.mxu0 %v171
    %189 = vmatprep.subr.bf16.mxu0 0
    %190 = vmatpush1.bf16.msra.mxu0 %v172
    %191 = vmatprep.subr.bf16.mxu0 0
    %192 = vmatpush1.bf16.msra.mxu0 %v173
    %193 = vmatprep.subr.bf16.mxu0 0
    %194 = vmatpush1.bf16.msra.mxu0 %v174
    %195 = vmatprep.subr.bf16.mxu0 0
    %196 = vmatpush1.bf16.msra.mxu0 %v175
    %197 = vmatprep.subr.bf16.mxu0 0
    %198 = vmatpush1.bf16.msra.mxu0 %v176
    %199 = vmatprep.subr.bf16.mxu0 0
    %200 = vmatpush1.bf16.msra.mxu0 %v177
    %201 = vmatprep.subr.bf16.mxu0 0
    %202 = vmatpush1.bf16.msra.mxu0 %v178
    %203 = vmatprep.subr.bf16.mxu0 0
    %204 = vmatpush1.bf16.msra.mxu0 0
    %205 = vmatprep.subr.bf16.mxu0 0
    %206 = vmatpush1.bf16.msra.mxu0 0
    %207 = vmatprep.subr.bf16.mxu0 0
    %208 = vmatpush1.bf16.msra.mxu0 0
    %209 = vmatprep.subr.bf16.mxu0 0
    %210 = vmatpush1.bf16.msra.mxu0 0
    %211 = vmatprep.subr.bf16.mxu0 0
    %212 = vmatpush1.bf16.msra.mxu0 0
    %213 = vmatprep.subr.bf16.mxu0 0
    %214 = vmatpush1.bf16.msra.mxu0 0
    %215 = vmatprep.subr.bf16.mxu0 0
    %216 = vmatpush1.bf16.msra.mxu0 0
    %217 = vmatprep.subr.bf16.mxu0 0
    %218 = vmatpush1.bf16.msra.mxu0 0
    %219 = vmatprep.mubr.bf16.mxu0 0
    %220 = vmatmul.mubr.bf16.gmra.mrb[0].mxu0 %v115
    %v221 = vpop.f32.mrb[0].mxu0
    %v222 = vadd.f32 %v137, %v221
    %v223 = vpop.f32.mrb[0].mxu0
    %v224 = vpop.f32.mrb[0].mxu0
    %v225 = vadd.f32 %v137, %v224
    %v226 = vpop.f32.mrb[0].mxu0
    %227 = vdwg.mxu0
    %228 = vst.msk [vmem:[#allocation2] sm:$0xff] %vm52, %v222
    %229 = vst.msk [vmem:[#allocation2 + $0x8] sm:$0xff] %vm52, %v225
    // Predicated region
    $region22: #{mlp_pallas.1} parent=1 // pred_check
      _
    $region23: #{mlp_pallas.1} parent=1 // pred_check_branch
      %231 = sbr.rel (0) target = $region25
    $region24: #{mlp_pallas.1} parent=1 // pred_region
      %s233 = ssub.s32 256, 256
      %234 = vsyncadd [#allocation3], %s233
      %s235 = sshll.u32 [#allocation2], 4
      %s236 = int_to_ptr.vmem [resolvable:$true] %s235
      %241 = dma.vmem_to_hbm [thread:$0]  %s236, 256, %s5, [#allocation3], 128, 128, 8
    $region25: #{mlp_pallas.1} parent=1 // pred_fallthru
      _
    // Predicated region
    $region26: #{mlp_pallas.1} parent=1 // pred_check
      _
    $region27: #{mlp_pallas.1} parent=1 // pred_check_branch
      %243 = sbr.rel (0) target = $region29
    $region28: #{mlp_pallas.1} parent=1 // pred_region
      %244 = dma.done [#allocation3], 256
    $region29: #{mlp_pallas.1} parent=1 // pred_fallthru
      _
    %245 = vsyncpa [#allocation3], 1

</llo_original>
